<compile_context>
chip_gen: v6e
topology: v6e:2x2x1
jax: 0.10.0
libtpu: 0.0.40
codegen_flags: <defaults>
</compile_context>

<pallas_src>
import jax
import jax.numpy as jnp
from jax.experimental import pallas as pl
from jax.experimental.pallas import tpu as pltpu


def _round_up(n, m):
    return ((n + m - 1) // m) * m


def _single_buffer_supported() -> bool:
    """One-time (import-time) capability check for pl.Buffered(1)."""
    try:
        pl.BlockSpec((8, 128), lambda i: (0, 0), pipeline_mode=pl.Buffered(1))
        return True
    except Exception:
        return False


_SINGLE_BUFFER_OK = _single_buffer_supported()


def _box_head_kernel(x_ref, bias6_ref, w6x_ref, w7_ref, b7_ref, o_ref):
    # x_ref:     (TM, F)           flattened per-box features       (pipelined)
    # bias6_ref: (batch, R)  f32   per-image descriptors@w6_d + b6  (resident)
    # w6x_ref:   (F, R)   w7_ref: (R, R)   b7_ref: (1, R)           (resident)
    # o_ref:     (TM, R)
    wdt = w6x_ref.dtype
    b = pl.program_id(0)                      # image index for this tile
    # fc6: feature part on the MXU (f32 accumulation); descriptor part arrives
    # pre-reduced as a per-image bias row -> VPU add + ReLU (free under MXU).
    h = jnp.dot(x_ref[...].astype(wdt), w6x_ref[...],
                preferred_element_type=jnp.float32)
    h = jnp.maximum(h + bias6_ref[pl.ds(b, 1), :], 0.0)
    # fc7 (+ bias + ReLU), f32 accumulation.
    h2 = jnp.dot(h.astype(wdt), w7_ref[...],
                 preferred_element_type=jnp.float32)
    o_ref[...] = jnp.maximum(h2 + b7_ref[...], 0.0).astype(o_ref.dtype)


def box_head_forward(x, descriptors, w6, b6, w7, b7, *,
                     row_tile=256,
                     compute_dtype=jnp.bfloat16,
                     out_dtype=None,
                     single_buffer_weights=True,
                     vmem_limit_bytes=None):
    """JAX/Pallas equivalent of TFRCNNBoxHead.forward.

    x:           (N, C, H, W)        N = batch_size * num_anchors_boxes
    descriptors: (batch_size, D)
    w6: (C*H*W + D, rep)   b6: (rep,)   (Linear weights pre-transposed: (in, out))
    w7: (rep, rep)         b7: (rep,)
    """
    assert row_tile % 8 == 0
    N = x.shape[0]
    batch_size, D = descriptors.shape
    num_anchors = N // batch_size
    assert num_anchors * batch_size == N

    x_flat = x.reshape(N, -1)                 # torch.flatten(start_dim=1)
    feat = x_flat.shape[1]
    rep = w6.shape[1]
    assert w6.shape[0] == feat + D

    dt = jnp.dtype(compute_dtype)
    out_dt = jnp.dtype(out_dtype) if out_dtype is not None else dt

    # Split w6 by rows:  concat([x, d], 1) @ w6 == x @ w6[:feat] + d @ w6[feat:].
    # The descriptor half is reduced once (batch x D x rep flops, negligible)
    # into a per-image f32 bias table that also absorbs b6.
    w6x = w6[:feat].astype(dt)
    w7c = w7.astype(dt)
    desc_bias = (jnp.dot(descriptors.astype(jnp.float32),
                         w6[feat:].astype(jnp.float32), precision="highest")
                 + b6.astype(jnp.float32))                       # (batch, rep)
    b7_2d = b7.reshape(1, rep).astype(jnp.float32)

    # Keep x in its input dtype (the kernel casts per tile on the VPU); the
    # reshape to (batch, num_anchors, feat) is free (contiguous) and lets the
    # BlockSpec pick the right image without padding or row duplication.
    x3 = x_flat.reshape(batch_size, num_anchors, feat)

    tile = min(row_tile, _round_up(num_anchors, 8))
    grid = (batch_size, pl.cdiv(num_anchors, tile))

    single_buffer = single_buffer_weights and _SINGLE_BUFFER_OK

    def _resident(shape):
        if single_buffer:
            return pl.BlockSpec(shape, lambda b, i: (0, 0),
                                pipeline_mode=pl.Buffered(1))
        return pl.BlockSpec(shape, lambda b, i: (0, 0))

    in_specs = [
        pl.BlockSpec((None, tile, feat), lambda b, i: (b, i, 0)),  # x tile
        _resident((batch_size, rep)),                              # desc_bias
        _resident((feat, rep)),                                    # w6 (feature rows)
        _resident((rep, rep)),                                     # w7
        _resident((1, rep)),                                       # b7
    ]
    out_specs = pl.BlockSpec((None, tile, rep), lambda b, i: (b, i, 0))

    # VMEM budget: pipelined x / out tiles + resident weights (single- or
    # double-buffered) + the f32 fc6 intermediate.  Capped at 56 MiB so the
    # scoped limit always leaves headroom below v7x's 64 MiB physical VMEM.
    wbuf = 1 if single_buffer else 2
    est = (2 * tile * feat * x.dtype.itemsize
           + wbuf * (feat + rep) * rep * dt.itemsize
           + wbuf * (batch_size + 1) * rep * 4
           + 2 * tile * rep * out_dt.itemsize
           + tile * rep * 4)
    if vmem_limit_bytes is None:
        vmem_limit_bytes = int(min(56 * 2 ** 20, max(32 * 2 ** 20, 2 * est)))

    cost = pl.CostEstimate(
        flops=2 * N * feat * rep + 2 * N * rep * rep,
        transcendentals=0,
        bytes_accessed=(N * feat * x.dtype.itemsize
                        + (feat + rep) * rep * dt.itemsize
                        + (batch_size + 1) * rep * 4
                        + N * rep * out_dt.itemsize),
    )

    out = pl.pallas_call(
        _box_head_kernel,
        out_shape=jax.ShapeDtypeStruct((batch_size, num_anchors, rep), out_dt),
        grid_spec=pltpu.PrefetchScalarGridSpec(
            num_scalar_prefetch=0,
            grid=grid,
            in_specs=in_specs,
            out_specs=out_specs,
        ),
        compiler_params=pltpu.CompilerParams(
            dimension_semantics=("parallel", "parallel"),
            vmem_limit_bytes=vmem_limit_bytes,
        ),
        cost_estimate=cost,
    )(x3, desc_bias, w6x, w7c, b7_2d)

    return out.reshape(N, rep)


def reference_forward(x, descriptors, w6, b6, w7, b7):
    N = x.shape[0]
    num_anchors = N // descriptors.shape[0]
    x_flat = x.reshape(N, -1)
    d = jnp.repeat(descriptors, num_anchors, axis=0)
    x_cat = jnp.concatenate([x_flat, d], axis=1)
    h = jax.nn.relu(jnp.dot(x_cat, w6, precision="highest") + b6)
    return jax.nn.relu(jnp.dot(h, w7, precision="highest") + b7)


if __name__ == "__main__":
    key = jax.random.PRNGKey(0)

    # Small shapes consistent with the module:
    #   batch_size=2 images, num_anchors_boxes=100 boxes/image -> N=200 rows
    #   (100 is not a multiple of the row tile -> exercises partial blocks)
    #   per-box feature map (4, 4, 4) -> 64 flattened feats, descriptor dim 64
    #   => in_channels = 64 + 64 = 128, representation_size = 128
    batch_size, num_anchors = 2, 100
    C, H, W = 4, 4, 4
    desc_dim = 64
    rep_size = 128
    in_channels = C * H * W + desc_dim

    k1, k2, k3, k4, k5, k6 = jax.random.split(key, 6)
    x = jax.random.normal(k1, (batch_size * num_anchors, C, H, W), jnp.float32)
    descriptors = jax.random.normal(k2, (batch_size, desc_dim), jnp.float32)

    # Deterministic synthetic params (Linear stored pre-transposed: (in, out)).
    w6 = jax.random.normal(k3, (in_channels, rep_size), jnp.float32) * 0.05
    b6 = jax.random.normal(k4, (rep_size,), jnp.float32) * 0.05
    w7 = jax.random.normal(k5, (rep_size, rep_size), jnp.float32) * 0.05
    b7 = jax.random.normal(k6, (rep_size,), jnp.float32) * 0.05

    ref = reference_forward(x, descriptors, w6, b6, w7, b7)

    # f32 compute path, small row tile -> grid (2, 2) with a partial last
    # block per image -- tight check.
    out_f32 = jax.block_until_ready(
        box_head_forward(x, descriptors, w6, b6, w7, b7,
                         row_tile=64, compute_dtype=jnp.float32,
                         out_dtype=jnp.float32))
    assert out_f32.shape == (batch_size * num_anchors, rep_size)
    assert jnp.allclose(out_f32, ref, atol=1e-3, rtol=1e-3)

    # bf16 fast path (bf16 operands + output, f32 accumulation), default row
    # tile -> grid (2, 1) -- loose check.
    out_bf16 = jax.block_until_ready(
        box_head_forward(x, descriptors, w6, b6, w7, b7,
                         compute_dtype=jnp.bfloat16))
    assert out_bf16.shape == (batch_size * num_anchors, rep_size)
    assert out_bf16.dtype == jnp.bfloat16
    assert jnp.allclose(out_bf16.astype(jnp.float32), ref, atol=6e-2, rtol=6e-2)

    print("KERNEL_OK")
</pallas_src>

<mosaic_0001>
module attributes {stable_mosaic.version = 11 : i64} {
  func.func @_box_head_kernel(%arg0: i32, %arg1: i32, %arg2: memref<1x64x64xf32, #tpu.memory_space<vmem>>, %arg3: memref<2x128xf32, #tpu.memory_space<vmem>>, %arg4: memref<64x128xf32, #tpu.memory_space<vmem>>, %arg5: memref<128x128xf32, #tpu.memory_space<vmem>>, %arg6: memref<1x128xf32, #tpu.memory_space<vmem>>, %arg7: memref<1x64x128xf32, #tpu.memory_space<vmem>>) attributes {dimension_semantics = [#tpu.dimension_semantics<parallel>, #tpu.dimension_semantics<parallel>], iteration_bounds = array<i64: 2, 2>, scalar_prefetch = 0 : i64, scratch_operands = 0 : i64, tpu.core_type = #tpu.core_type<tc>, window_params = [{transform_indices = @transform_0, window_bounds = array<i64: 1, 64, 64>}, {pipeline_mode = #tpu.pipeline_mode<synchronous>, transform_indices = @transform_1, window_bounds = array<i64: 2, 128>}, {pipeline_mode = #tpu.pipeline_mode<synchronous>, transform_indices = @transform_2, window_bounds = array<i64: 64, 128>}, {pipeline_mode = #tpu.pipeline_mode<synchronous>, transform_indices = @transform_3, window_bounds = array<i64: 128, 128>}, {pipeline_mode = #tpu.pipeline_mode<synchronous>, transform_indices = @transform_4, window_bounds = array<i64: 1, 128>}, {transform_indices = @transform_5, window_bounds = array<i64: 1, 64, 128>}]} {
    %c0 = arith.constant 0 : index
    %c0_0 = arith.constant 0 : index
    %c0_1 = arith.constant 0 : index
    %0 = vector.load %arg2[%c0, %c0_0, %c0_1] : memref<1x64x64xf32, #tpu.memory_space<vmem>>, vector<1x64x64xf32>
    %1 = vector.shape_cast %0 : vector<1x64x64xf32> to vector<64x64xf32>
    %c0_2 = arith.constant 0 : index
    %c0_3 = arith.constant 0 : index
    %2 = vector.load %arg4[%c0_2, %c0_3] : memref<64x128xf32, #tpu.memory_space<vmem>>, vector<64x128xf32>
    %cst = arith.constant dense<0.000000e+00> : vector<64x128xf32>
    %3 = tpu.matmul %1, %2, %cst {dimension_numbers = #tpu.dot_dimension_numbers<[1], [0], [0], [1], [0, 0, 1, 1], [], []>} : vector<64x64xf32>, vector<64x128xf32>, vector<64x128xf32> -> vector<64x128xf32>
    %4 = arith.index_cast %arg0 : i32 to index
    %c0_4 = arith.constant 0 : index
    %5 = vector.load %arg3[%4, %c0_4] : memref<2x128xf32, #tpu.memory_space<vmem>>, vector<1x128xf32>
    %6 = vector.broadcast %5 : vector<1x128xf32> to vector<64x128xf32>
    %7 = arith.addf %3, %6 : vector<64x128xf32>
    %cst_5 = arith.constant 0.000000e+00 : f32
    %8 = vector.broadcast %cst_5 : f32 to vector<64x128xf32>
    %9 = arith.maximumf %7, %8 : vector<64x128xf32>
    %c0_6 = arith.constant 0 : index
    %c0_7 = arith.constant 0 : index
    %10 = vector.load %arg5[%c0_6, %c0_7] : memref<128x128xf32, #tpu.memory_space<vmem>>, vector<128x128xf32>
    %cst_8 = arith.constant dense<0.000000e+00> : vector<64x128xf32>
    %11 = tpu.matmul %9, %10, %cst_8 {dimension_numbers = #tpu.dot_dimension_numbers<[1], [0], [0], [1], [0, 0, 1, 1], [], []>} : vector<64x128xf32>, vector<128x128xf32>, vector<64x128xf32> -> vector<64x128xf32>
    %c0_9 = arith.constant 0 : index
    %c0_10 = arith.constant 0 : index
    %12 = vector.load %arg6[%c0_9, %c0_10] : memref<1x128xf32, #tpu.memory_space<vmem>>, vector<1x128xf32>
    %13 = vector.broadcast %12 : vector<1x128xf32> to vector<64x128xf32>
    %14 = arith.addf %11, %13 : vector<64x128xf32>
    %cst_11 = arith.constant 0.000000e+00 : f32
    %15 = vector.broadcast %cst_11 : f32 to vector<64x128xf32>
    %16 = arith.maximumf %14, %15 : vector<64x128xf32>
    %c0_12 = arith.constant 0 : index
    %c0_13 = arith.constant 0 : index
    %c0_14 = arith.constant 0 : index
    %17 = vector.load %arg7[%c0_12, %c0_13, %c0_14] : memref<1x64x128xf32, #tpu.memory_space<vmem>>, vector<1x64x128xf32>
    %18 = vector.shape_cast %17 : vector<1x64x128xf32> to vector<64x128xf32>
    %19 = vector.shape_cast %16 : vector<64x128xf32> to vector<1x64x128xf32>
    tpu.vector_store %arg7[%c0_12, %c0_13, %c0_14], %19 {strides = array<i32>} : memref<1x64x128xf32, #tpu.memory_space<vmem>>, vector<1x64x128xf32>,
    return
  }
  func.func @transform_0(%arg0: i32, %arg1: i32) -> (i32, i32, i32) {
    %c0_i32 = arith.constant 0 : i32
    %c0_i32_0 = arith.constant 0 : i32
    return %arg0, %arg1, %c0_i32 : i32, i32, i32
  }
  func.func @transform_1(%arg0: i32, %arg1: i32) -> (i32, i32) {
    %c0_i32 = arith.constant 0 : i32
    %c0_i32_0 = arith.constant 0 : i32
    %c0_i32_1 = arith.constant 0 : i32
    return %c0_i32, %c0_i32_0 : i32, i32
  }
  func.func @transform_2(%arg0: i32, %arg1: i32) -> (i32, i32) {
    %c0_i32 = arith.constant 0 : i32
    %c0_i32_0 = arith.constant 0 : i32
    %c0_i32_1 = arith.constant 0 : i32
    return %c0_i32, %c0_i32_0 : i32, i32
  }
  func.func @transform_3(%arg0: i32, %arg1: i32) -> (i32, i32) {
    %c0_i32 = arith.constant 0 : i32
    %c0_i32_0 = arith.constant 0 : i32
    %c0_i32_1 = arith.constant 0 : i32
    return %c0_i32, %c0_i32_0 : i32, i32
  }
  func.func @transform_4(%arg0: i32, %arg1: i32) -> (i32, i32) {
    %c0_i32 = arith.constant 0 : i32
    %c0_i32_0 = arith.constant 0 : i32
    %c0_i32_1 = arith.constant 0 : i32
    return %c0_i32, %c0_i32_0 : i32, i32
  }
  func.func @transform_5(%arg0: i32, %arg1: i32) -> (i32, i32, i32) {
    %c0_i32 = arith.constant 0 : i32
    %c0_i32_0 = arith.constant 0 : i32
    return %arg0, %arg1, %c0_i32 : i32, i32, i32
  }
}

</mosaic_0001>

<llo_original>
// kernel: tpu_custom_call.1
$region0: #{tpu_custom_call.1}
  #allocation0 [shape = 'u32[]', space=smem, size = 0x4, offset = 0x4, fixed_abs, tag = 'smem constant byte address 0x4 - core index']
  #allocation1 [shape = 'u32[144,128]{1,0:T(1,128)}', space=vmem, size = 0x12000, scoped, tag = 'internal scratch']
  %s0 = inlined_call_operand.vmem [shape: f32[2,100,64], index: 0, kind: input, shape index: {}]
  %s1 = inlined_call_operand.vmem [shape: f32[2,128], index: 1, kind: input, shape index: {}]
  %s2 = inlined_call_operand.vmem [shape: f32[64,128], index: 2, kind: input, shape index: {}]
  %s3 = inlined_call_operand.vmem [shape: f32[128,128], index: 3, kind: input, shape index: {}]
  %s4 = inlined_call_operand.vmem [shape: f32[1,128], index: 4, kind: input, shape index: {}]
  %s5 = inlined_call_operand.vmem [shape: f32[2,100,128], index: 5, kind: output, shape index: {}]
  %s6 = sld [smem:[#allocation0]]
  $region101: #{tpu_custom_call.1} parent=0
    _
  %s8 = ssub.s32 1, %s6
  %s9 = scalar_select 0, %s8, %s6
  $region1: #{tpu_custom_call.1} parent=0
    #allocation2 [shape = 'u8[65536]{0}', space=vmem, size = 0x10000, scoped, tag = 'output window, operand 0']
    loop: start=0, step=1, limit=6
    $region2: #{tpu_custom_call.1} parent=1 // loop_pre_header
      _
    $region3: #{tpu_custom_call.1} parent=1 // loop_header
      %s11 = sphi 0, %s15
      %p12 = scmp.ge.s32.totalorder %s11, 6
      %s18 = sphi 0, %s30
      %s19 = sphi 0, %s26
      %s20 = sphi 0, %s18
      %s21 = sphi 0, %s19
      %s22 = sphi 0, %s20
      %s23 = sphi 0, %s21
      %s35 = sphi 0, %s37
      %s38 = sphi 0, %s35
      %s39 = sphi 0, %s38
      %s55 = sphi 0, %s39
      %s59 = sphi 0, %s59
      %s61 = sphi 0, %s59
      %s62 = sphi 0, %s61
      %s76 = sphi 0, %s62
      %s80 = sphi 0, %s80
      %s82 = sphi 0, %s80
      %s83 = sphi 0, %s82
      %s97 = sphi 0, %s83
      %s101 = sphi 0, %s101
      %s103 = sphi 0, %s101
      %s104 = sphi 0, %s103
      %s118 = sphi 0, %s104
      %s122 = sphi 0, %s122
      %s124 = sphi 0, %s122
      %s125 = sphi 0, %s124
      %s139 = sphi 0, %s125
      %s147 = sphi 0, %s149
      %s150 = sphi 0, %s147
      %s151 = sphi 0, %s150
      %s167 = sphi 0, %s151
    $region4: #{tpu_custom_call.1} parent=1 // loop_header_branch
      %14 = sbr.rel (%p12) target = $region8
    $region5: #{tpu_custom_call.1} parent=1 // loop_body
      %s16 = ssub.s32 %s11, 1
      %s17 = ssub.s32 %s11, 2
      %s24 = sadd.s32 1, %s19
      %p25 = scmp.ge.s32.totalorder %s24, 2
      %s26 = scalar_select %p25, 0, %s24
      %s27 = sadd.s32 1, %s18
      %s28 = scalar_select %p25, %s27, %s18
      %p29 = scmp.ge.s32.totalorder %s28, 2
      %s30 = scalar_select %p29, 0, %s28
      %s31 = ssub.s32 %s18, %s30
      %s32 = ssub.s32 %s19, %s26
      %s33 = sor.u32 %s31, %s32
      %p34 = scmp.eq.s32.totalorder %s33, 0
      %s36 = sadd.s32 %s35, 1
      %s37 = scalar_select %p34, %s35, %s36
      %p40 = pneg %p34
      %p41 = scmp.eq.s32.totalorder %s11, 3
      %p42 = por %p40, %p41
      %p43 = scmp.ne.s32.totalorder %s35, %s38
      %p44 = scmp.eq.s32.totalorder %s11, 0
      %p45 = por %p43, %p44
      %p46 = scmp.ne.s32.totalorder %s35, %s38
      %p47 = scmp.eq.s32.totalorder %s16, 3
      %p48 = por %p46, %p47
      %p49 = scmp.ne.s32.totalorder %s38, %s39
      %p50 = scmp.eq.s32.totalorder %s16, 0
      %p51 = por %p49, %p50
      %p52 = scmp.ne.s32.totalorder %s38, %s39
      %p53 = scmp.eq.s32.totalorder %s17, 3
      %p54 = por %p52, %p53
      %p56 = scmp.ne.s32.totalorder %s39, %s55
      %p57 = scmp.eq.s32.totalorder %s17, 0
      %p58 = por %p56, %p57
      %s60 = sadd.s32 %s59, 1
      %p63 = scmp.eq.s32.totalorder %s11, 3
      %p64 = scmp.ne.s32.totalorder %s59, %s61
      %p65 = scmp.eq.s32.totalorder %s11, 0
      %p66 = por %p64, %p65
      %p67 = scmp.ne.s32.totalorder %s59, %s61
      %p68 = scmp.eq.s32.totalorder %s16, 3
      %p69 = por %p67, %p68
      %p70 = scmp.ne.s32.totalorder %s61, %s62
      %p71 = scmp.eq.s32.totalorder %s16, 0
      %p72 = por %p70, %p71
      %p73 = scmp.ne.s32.totalorder %s61, %s62
      %p74 = scmp.eq.s32.totalorder %s17, 3
      %p75 = por %p73, %p74
      %p77 = scmp.ne.s32.totalorder %s62, %s76
      %p78 = scmp.eq.s32.totalorder %s17, 0
      %p79 = por %p77, %p78
      %s81 = sadd.s32 %s80, 1
      %p84 = scmp.eq.s32.totalorder %s11, 3
      %p85 = scmp.ne.s32.totalorder %s80, %s82
      %p86 = scmp.eq.s32.totalorder %s11, 0
      %p87 = por %p85, %p86
      %p88 = scmp.ne.s32.totalorder %s80, %s82
      %p89 = scmp.eq.s32.totalorder %s16, 3
      %p90 = por %p88, %p89
      %p91 = scmp.ne.s32.totalorder %s82, %s83
      %p92 = scmp.eq.s32.totalorder %s16, 0
      %p93 = por %p91, %p92
      %p94 = scmp.ne.s32.totalorder %s82, %s83
      %p95 = scmp.eq.s32.totalorder %s17, 3
      %p96 = por %p94, %p95
      %p98 = scmp.ne.s32.totalorder %s83, %s97
      %p99 = scmp.eq.s32.totalorder %s17, 0
      %p100 = por %p98, %p99
      %s102 = sadd.s32 %s101, 1
      %p105 = scmp.eq.s32.totalorder %s11, 3
      %p106 = scmp.ne.s32.totalorder %s101, %s103
      %p107 = scmp.eq.s32.totalorder %s11, 0
      %p108 = por %p106, %p107
      %p109 = scmp.ne.s32.totalorder %s101, %s103
      %p110 = scmp.eq.s32.totalorder %s16, 3
      %p111 = por %p109, %p110
      %p112 = scmp.ne.s32.totalorder %s103, %s104
      %p113 = scmp.eq.s32.totalorder %s16, 0
      %p114 = por %p112, %p113
      %p115 = scmp.ne.s32.totalorder %s103, %s104
      %p116 = scmp.eq.s32.totalorder %s17, 3
      %p117 = por %p115, %p116
      %p119 = scmp.ne.s32.totalorder %s104, %s118
      %p120 = scmp.eq.s32.totalorder %s17, 0
      %p121 = por %p119, %p120
      %s123 = sadd.s32 %s122, 1
      %p126 = scmp.eq.s32.totalorder %s11, 3
      %p127 = scmp.ne.s32.totalorder %s122, %s124
      %p128 = scmp.eq.s32.totalorder %s11, 0
      %p129 = por %p127, %p128
      %p130 = scmp.ne.s32.totalorder %s122, %s124
      %p131 = scmp.eq.s32.totalorder %s16, 3
      %p132 = por %p130, %p131
      %p133 = scmp.ne.s32.totalorder %s124, %s125
      %p134 = scmp.eq.s32.totalorder %s16, 0
      %p135 = por %p133, %p134
      %p136 = scmp.ne.s32.totalorder %s124, %s125
      %p137 = scmp.eq.s32.totalorder %s17, 3
      %p138 = por %p136, %p137
      %p140 = scmp.ne.s32.totalorder %s125, %s139
      %p141 = scmp.eq.s32.totalorder %s17, 0
      %p142 = por %p140, %p141
      %s143 = ssub.s32 %s18, %s30
      %s144 = ssub.s32 %s19, %s26
      %s145 = sor.u32 %s143, %s144
      %p146 = scmp.eq.s32.totalorder %s145, 0
      %s148 = sadd.s32 %s147, 1
      %s149 = scalar_select %p146, %s147, %s148
      %p152 = pneg %p146
      %p153 = scmp.eq.s32.totalorder %s11, 3
      %p154 = por %p152, %p153
      %p155 = scmp.ne.s32.totalorder %s147, %s150
      %p156 = scmp.eq.s32.totalorder %s11, 0
      %p157 = por %p155, %p156
      %p158 = scmp.ne.s32.totalorder %s147, %s150
      %p159 = scmp.eq.s32.totalorder %s16, 3
      %p160 = por %p158, %p159
      %p161 = scmp.ne.s32.totalorder %s150, %s151
      %p162 = scmp.eq.s32.totalorder %s16, 0
      %p163 = por %p161, %p162
      %p164 = scmp.ne.s32.totalorder %s150, %s151
      %p165 = scmp.eq.s32.totalorder %s17, 3
      %p166 = por %p164, %p165
      %p168 = scmp.ne.s32.totalorder %s151, %s167
      %p169 = scmp.eq.s32.totalorder %s17, 0
      %p170 = por %p168, %p169
      %p171 = scmp.le.s32.totalorder 1, %s11
      %p172 = scmp.lt.s32.totalorder %s11, 5
      %p173 = pnand %p171, %p172
      %p174 = pneg %p173
      // Predicated region
      $region9: #{tpu_custom_call.1} parent=5 // pred_check
        _
      $region10: #{tpu_custom_call.1} parent=5 // pred_check_branch
        %176 = sbr.rel (%p173) target = $region12
      $region11: #{tpu_custom_call.1} parent=5 // pred_region
        %s177 = ssub.s32 %s11, 1
        // Predicated region
        $region13: #{tpu_custom_call.1} parent=11 // pred_check
          %p178 = pneg %p72
        $region14: #{tpu_custom_call.1} parent=11 // pred_check_branch
          %180 = sbr.rel (%p178) target = $region16
        $region15: #{tpu_custom_call.1} parent=11 // pred_region
          _
        $region16: #{tpu_custom_call.1} parent=11 // pred_fallthru
          _
        // Predicated region
        $region17: #{tpu_custom_call.1} parent=11 // pred_check
          %p181 = pneg %p93
        $region18: #{tpu_custom_call.1} parent=11 // pred_check_branch
          %183 = sbr.rel (%p181) target = $region20
        $region19: #{tpu_custom_call.1} parent=11 // pred_region
          _
        $region20: #{tpu_custom_call.1} parent=11 // pred_fallthru
          _
        // Predicated region
        $region21: #{tpu_custom_call.1} parent=11 // pred_check
          %p184 = pneg %p114
        $region22: #{tpu_custom_call.1} parent=11 // pred_check_branch
          %186 = sbr.rel (%p184) target = $region24
        $region23: #{tpu_custom_call.1} parent=11 // pred_region
          _
        $region24: #{tpu_custom_call.1} parent=11 // pred_fallthru
          _
        // Predicated region
        $region25: #{tpu_custom_call.1} parent=11 // pred_check
          %p187 = pneg %p135
        $region26: #{tpu_custom_call.1} parent=11 // pred_check_branch
          %189 = sbr.rel (%p187) target = $region28
        $region27: #{tpu_custom_call.1} parent=11 // pred_region
          _
        $region28: #{tpu_custom_call.1} parent=11 // pred_fallthru
          _
      $region12: #{tpu_custom_call.1} parent=5 // pred_fallthru
        _
      %p190 = scmp.lt.s32.totalorder %s11, 4
      // Predicated region
      $region29: #{tpu_custom_call.1} parent=5 // pred_check
        %p191 = pneg %p190
      $region30: #{tpu_custom_call.1} parent=5 // pred_check_branch
        %193 = sbr.rel (%p191) target = $region32
      $region31: #{tpu_custom_call.1} parent=5 // pred_region
        // Predicated region
        $region33: #{tpu_custom_call.1} parent=31 // pred_check
          %p194 = pneg %p45
        $region34: #{tpu_custom_call.1} parent=31 // pred_check_branch
          %196 = sbr.rel (%p194) target = $region36
        $region35: #{tpu_custom_call.1} parent=31 // pred_region
          %s197 = smul.u32 8, %s19
          %s198 = ssub.s32 13, %s197
          %p199 = scmp.lt.s32.totalorder %s198, 8
          %s200 = scalar_select %p199, %s198, 8
          %s201 = smul.u32 128, %s200
          %p202 = scmp.lt.s32.totalorder %s18, 1
          %s203 = scalar_select %p202, %s18, 1
          %p204 = scmp.lt.s32.totalorder %s197, 12
          %s205 = scalar_select %p204, %s197, 12
          %s206 = smul.addr %s203, 13
          %s207 = sadd.s32 %s205, %s206
          %s208 = smul.addr %s207, 8
          %s209 = scalar_lea.vmem %s0, %s208
          %s210 = smul.u32 8, %s19
          %s211 = ssub.s32 13, %s210
          %p212 = scmp.lt.s32.totalorder %s211, 8
          %s213 = scalar_select %p212, %s211, 8
          %s214 = smul.u32 128, %s213
        $region36: #{tpu_custom_call.1} parent=31 // pred_fallthru
          _
      $region32: #{tpu_custom_call.1} parent=5 // pred_fallthru
        _
      %p215 = scmp.le.s32.totalorder 1, %s11
      %p216 = scmp.lt.s32.totalorder %s11, 5
      %p217 = pnand %p215, %p216
      %p218 = pneg %p217
      // Predicated region
      $region37: #{tpu_custom_call.1} parent=5 // pred_check
        _
      $region38: #{tpu_custom_call.1} parent=5 // pred_check_branch
        %220 = sbr.rel (%p217) target = $region40
      $region39: #{tpu_custom_call.1} parent=5 // pred_region
        %s221 = ssub.s32 %s11, 1
        %s222 = smul.u32 8, %s21
        %s223 = ssub.s32 13, %s222
        %p224 = scmp.lt.s32.totalorder %s223, 8
        %s225 = scalar_select %p224, %s223, 8
        %s226 = smul.u32 128, %s225
        %p227 = scmp.lt.s32.totalorder %s20, 1
        %s228 = scalar_select %p227, %s20, 1
        %p229 = scmp.lt.s32.totalorder %s222, 12
        %s230 = scalar_select %p229, %s222, 12
        %s231 = smul.addr %s228, 13
        %s232 = sadd.s32 %s230, %s231
        %s233 = smul.addr %s232, 8
        %s234 = scalar_lea.vmem %s0, %s233
        %p235 = pneg %p51
        %p236 = pneg %p48
        %p237 = pneg %p72
        %p238 = pneg %p69
        %p239 = pneg %p93
        %p240 = pneg %p90
        %p241 = pneg %p114
        %p242 = pneg %p111
        %p243 = pneg %p135
        %p244 = pneg %p132
        %p245 = pneg %p163
        %p246 = pneg %p160
        %s247 = sand.u32 %s150, 1
        %s248 = sand.u32 %s150, 1
        %s249 = smul.addr %s248, 64
        %s250 = scalar_lea.vmem [#allocation2], %s249
        %s251 = smul.u32 8, %s21
        %s252 = ssub.s32 13, %s251
        %p253 = scmp.lt.s32.totalorder %s252, 8
        %s254 = scalar_select %p253, %s252, 8
        %s255 = smul.u32 128, %s254
        %p256 = scmp.lt.s32.totalorder %s20, 1
        %s257 = scalar_select %p256, %s20, 1
        %p258 = scmp.lt.s32.totalorder %s251, 12
        %s259 = scalar_select %p258, %s251, 12
        %s260 = smul.addr %s257, 13
        %s261 = sadd.s32 %s259, %s260
        %s262 = smul.addr %s261, 8
        %s263 = scalar_lea.vmem %s0, %s262
        %s264 = smul.u32 8, %s21
        %s265 = ssub.s32 13, %s264
        %p266 = scmp.lt.s32.totalorder %s265, 8
        %s267 = scalar_select %p266, %s265, 8
        %s268 = smul.u32 128, %s267
        %s269 = smul.u32 8, %s21
        %s270 = ssub.s32 13, %s269
        %p271 = scmp.lt.s32.totalorder %s270, 8
        %s272 = scalar_select %p271, %s270, 8
        %s273 = smul.u32 128, %s272
        %v274 = vld [vmem:[%s263] sm:$0xff]
        %v275 = vld [vmem:[%s263 + $0x8] sm:$0xff]
        %v276 = vld [vmem:[%s263 + $0x10] sm:$0xff]
        %v277 = vld [vmem:[%s263 + $0x18] sm:$0xff]
        %v278 = vld [vmem:[%s263 + $0x20] sm:$0xff]
        %v279 = vld [vmem:[%s263 + $0x28] sm:$0xff]
        %v280 = vld [vmem:[%s263 + $0x30] sm:$0xff]
        %v281 = vld [vmem:[%s263 + $0x38] sm:$0xff]
        %v282 = vld [vmem:[%s2] sm:$0xff]
        %v283 = vld [vmem:[%s2 + $0x8] sm:$0xff]
        %v284 = vld [vmem:[%s2 + $0x10] sm:$0xff]
        %v285 = vld [vmem:[%s2 + $0x18] sm:$0xff]
        %v286 = vld [vmem:[%s2 + $0x20] sm:$0xff]
        %v287 = vld [vmem:[%s2 + $0x28] sm:$0xff]
        %v288 = vld [vmem:[%s2 + $0x30] sm:$0xff]
        %v289 = vld [vmem:[%s2 + $0x38] sm:$0xff]
        %s290 = scalar_lea.vmem %s1, %s20
        %v291 = vld [vmem:[%s290] sm:$0x1]
        %v292 = vlaneseq
        %v293 = vshrl.u32 %v292, 7
        %v294 = vsub.s32 0, %v293
        %v295 = vrot.slane %v291, %v294
        %vm296 = vcmask 523264
        %v298 = vsel %vm296, %v274, 0
        %v301 = vsel %vm296, %v275, 0
        %v304 = vsel %vm296, %v276, 0
        %v307 = vsel %vm296, %v277, 0
        %v310 = vsel %vm296, %v278, 0
        %v313 = vsel %vm296, %v279, 0
        %v316 = vsel %vm296, %v280, 0
        %v319 = vsel %vm296, %v281, 0
        %321 = vmatprep.subr.mxu0 0.0
        %322 = vmatpush1.msra.mxu0 0.0
        %323 = vmatprep.subr.mxu0 0.0
        %324 = vmatpush1.msra.mxu0 0.0
        %325 = vmatprep.subr.mxu0 0.0
        %326 = vmatpush1.msra.mxu0 0.0
        %327 = vmatprep.subr.mxu0 0.0
        %328 = vmatpush1.msra.mxu0 0.0
        %329 = vmatprep.subr.mxu0 0.0
        %330 = vmatpush1.msra.mxu0 0.0
        %331 = vmatprep.subr.mxu0 0.0
        %332 = vmatpush1.msra.mxu0 0.0
        %333 = vmatprep.subr.mxu0 0.0
        %334 = vmatpush1.msra.mxu0 0.0
        %335 = vmatprep.subr.mxu0 0.0
        %336 = vmatpush1.msra.mxu0 0.0
        %337 = vmatprep.subr.mxu0 0.0
        %338 = vmatpush1.msra.mxu0 %v289
        %339 = vmatprep.subr.mxu0 0.0
        %340 = vmatpush1.msra.mxu0 %v288
        %341 = vmatprep.subr.mxu0 0.0
        %342 = vmatpush1.msra.mxu0 %v287
        %343 = vmatprep.subr.mxu0 0.0
        %344 = vmatpush1.msra.mxu0 %v286
        %345 = vmatprep.subr.mxu0 0.0
        %346 = vmatpush1.msra.mxu0 %v285
        %347 = vmatprep.subr.mxu0 0.0
        %348 = vmatpush1.msra.mxu0 %v284
        %349 = vmatprep.subr.mxu0 0.0
        %350 = vmatpush1.msra.mxu0 %v283
        %351 = vmatprep.subr.mxu0 0.0
        %352 = vmatpush1.msra.mxu0 %v282
        %353 = vmatprep.subr.mxu0 0.0
        %354 = vmatpush2.msra.mxu0 0.0
        %355 = vmatprep.subr.mxu0 0.0
        %356 = vmatpush2.msra.mxu0 0.0
        %357 = vmatprep.subr.mxu0 0.0
        %358 = vmatpush2.msra.mxu0 0.0
        %359 = vmatprep.subr.mxu0 0.0
        %360 = vmatpush2.msra.mxu0 0.0
        %361 = vmatprep.subr.mxu0 0.0
        %362 = vmatpush2.msra.mxu0 0.0
        %363 = vmatprep.subr.mxu0 0.0
        %364 = vmatpush2.msra.mxu0 0.0
        %365 = vmatprep.subr.mxu0 0.0
        %366 = vmatpush2.msra.mxu0 0.0
        %367 = vmatprep.subr.mxu0 0.0
        %368 = vmatpush2.msra.mxu0 0.0
        %369 = vmatprep.subr.mxu0 0.0
        %370 = vmatpush2.msra.mxu0 0.0
        %371 = vmatprep.subr.mxu0 0.0
        %372 = vmatpush2.msra.mxu0 0.0
        %373 = vmatprep.subr.mxu0 0.0
        %374 = vmatpush2.msra.mxu0 0.0
        %375 = vmatprep.subr.mxu0 0.0
        %376 = vmatpush2.msra.mxu0 0.0
        %377 = vmatprep.subr.mxu0 0.0
        %378 = vmatpush2.msra.mxu0 0.0
        %379 = vmatprep.subr.mxu0 0.0
        %380 = vmatpush2.msra.mxu0 0.0
        %381 = vmatprep.subr.mxu0 0.0
        %382 = vmatpush2.msra.mxu0 0.0
        %383 = vmatprep.subr.mxu0 0.0
        %384 = vmatpush2.msra.mxu0 0.0
        %385 = vmatprep.mubr.f32.mxu0 0.0
        %386 = vmatmul.mubr.f32.gmra.mxu0 %v298
        %v387 = vpop.f32.mrf.mxu0
        %v388 = vadd.f32 %v295, %v387
        %v389 = vpop.f32.mrf.mxu0
        %390 = vmatprep.mubr.f32.mxu0 0.0
        %391 = vmatmul.mubr.f32.gmra.mxu0 %v301
        %v392 = vpop.f32.mrf.mxu0
        %v393 = vadd.f32 %v295, %v392
        %v394 = vpop.f32.mrf.mxu0
        %395 = vmatprep.mubr.f32.mxu0 0.0
        %396 = vmatmul.mubr.f32.gmra.mxu0 %v304
        %v397 = vpop.f32.mrf.mxu0
        %v398 = vadd.f32 %v295, %v397
        %v399 = vpop.f32.mrf.mxu0
        %400 = vmatprep.mubr.f32.mxu0 0.0
        %401 = vmatmul.mubr.f32.gmra.mxu0 %v307
        %v402 = vpop.f32.mrf.mxu0
        %v403 = vadd.f32 %v295, %v402
        %v404 = vpop.f32.mrf.mxu0
        %405 = vmatprep.mubr.f32.mxu0 0.0
        %406 = vmatmul.mubr.f32.gmra.mxu0 %v310
        %v407 = vpop.f32.mrf.mxu0
        %v408 = vadd.f32 %v295, %v407
        %v409 = vpop.f32.mrf.mxu0
        %410 = vmatprep.mubr.f32.mxu0 0.0
        %411 = vmatmul.mubr.f32.gmra.mxu0 %v313
        %v412 = vpop.f32.mrf.mxu0
        %v413 = vadd.f32 %v295, %v412
        %v414 = vpop.f32.mrf.mxu0
        %415 = vmatprep.mubr.f32.mxu0 0.0
        %416 = vmatmul.mubr.f32.gmra.mxu0 %v316
        %v417 = vpop.f32.mrf.mxu0
        %v418 = vadd.f32 %v295, %v417
        %v419 = vpop.f32.mrf.mxu0
        %420 = vmatprep.mubr.f32.mxu0 0.0
        %421 = vmatmul.mubr.f32.gmra.mxu0 %v319
        %v422 = vpop.f32.mrf.mxu0
        %v423 = vadd.f32 %v295, %v422
        %v424 = vpop.f32.mrf.mxu0
        %425 = vdwg.mxu0
        %v426 = vmax.f32 %v388, 0.0
        %v427 = vmax.f32 %v393, 0.0
        %v428 = vmax.f32 %v398, 0.0
        %v429 = vmax.f32 %v403, 0.0
        %v430 = vmax.f32 %v408, 0.0
        %v431 = vmax.f32 %v413, 0.0
        %v432 = vmax.f32 %v418, 0.0
        %v433 = vmax.f32 %v423, 0.0
        %v434 = vld [vmem:[%s3] sm:$0xff]
        %v435 = vld [vmem:[%s3 + $0x8] sm:$0xff]
        %v436 = vld [vmem:[%s3 + $0x10] sm:$0xff]
        %v437 = vld [vmem:[%s3 + $0x18] sm:$0xff]
        %v438 = vld [vmem:[%s3 + $0x20] sm:$0xff]
        %v439 = vld [vmem:[%s3 + $0x28] sm:$0xff]
        %v440 = vld [vmem:[%s3 + $0x30] sm:$0xff]
        %v441 = vld [vmem:[%s3 + $0x38] sm:$0xff]
        %v442 = vld [vmem:[%s3 + $0x40] sm:$0xff]
        %v443 = vld [vmem:[%s3 + $0x48] sm:$0xff]
        %v444 = vld [vmem:[%s3 + $0x50] sm:$0xff]
        %v445 = vld [vmem:[%s3 + $0x58] sm:$0xff]
        %v446 = vld [vmem:[%s3 + $0x60] sm:$0xff]
        %v447 = vld [vmem:[%s3 + $0x68] sm:$0xff]
        %v448 = vld [vmem:[%s3 + $0x70] sm:$0xff]
        %v449 = vld [vmem:[%s3 + $0x78] sm:$0xff]
        %v450 = vld [vmem:[%s4] sm:$0x1]
        %v452 = vlaneseq
        %v453 = vshrl.u32 %v452, 7
        %v454 = vsub.s32 0, %v453
        %v455 = vrot.slane %v450, %v454
        %457 = vmatprep.subr.mxu0 0.0
        %458 = vmatpush1.msra.mxu0 %v449
        %459 = vmatprep.subr.mxu0 0.0
        %460 = vmatpush1.msra.mxu0 %v448
        %461 = vmatprep.subr.mxu0 0.0
        %462 = vmatpush1.msra.mxu0 %v447
        %463 = vmatprep.subr.mxu0 0.0
        %464 = vmatpush1.msra.mxu0 %v446
        %465 = vmatprep.subr.mxu0 0.0
        %466 = vmatpush1.msra.mxu0 %v445
        %467 = vmatprep.subr.mxu0 0.0
        %468 = vmatpush1.msra.mxu0 %v444
        %469 = vmatprep.subr.mxu0 0.0
        %470 = vmatpush1.msra.mxu0 %v443
        %471 = vmatprep.subr.mxu0 0.0
        %472 = vmatpush1.msra.mxu0 %v442
        %473 = vmatprep.subr.mxu0 0.0
        %474 = vmatpush1.msra.mxu0 %v441
        %475 = vmatprep.subr.mxu0 0.0
        %476 = vmatpush1.msra.mxu0 %v440
        %477 = vmatprep.subr.mxu0 0.0
        %478 = vmatpush1.msra.mxu0 %v439
        %479 = vmatprep.subr.mxu0 0.0
        %480 = vmatpush1.msra.mxu0 %v438
        %481 = vmatprep.subr.mxu0 0.0
        %482 = vmatpush1.msra.mxu0 %v437
        %483 = vmatprep.subr.mxu0 0.0
        %484 = vmatpush1.msra.mxu0 %v436
        %485 = vmatprep.subr.mxu0 0.0
        %486 = vmatpush1.msra.mxu0 %v435
        %487 = vmatprep.subr.mxu0 0.0
        %488 = vmatpush1.msra.mxu0 %v434
        %489 = vmatprep.subr.mxu0 0.0
        %490 = vmatpush2.msra.mxu0 0.0
        %491 = vmatprep.subr.mxu0 0.0
        %492 = vmatpush2.msra.mxu0 0.0
        %493 = vmatprep.subr.mxu0 0.0
        %494 = vmatpush2.msra.mxu0 0.0
        %495 = vmatprep.subr.mxu0 0.0
        %496 = vmatpush2.msra.mxu0 0.0
        %497 = vmatprep.subr.mxu0 0.0
        %498 = vmatpush2.msra.mxu0 0.0
        %499 = vmatprep.subr.mxu0 0.0
        %500 = vmatpush2.msra.mxu0 0.0
        %501 = vmatprep.subr.mxu0 0.0
        %502 = vmatpush2.msra.mxu0 0.0
        %503 = vmatprep.subr.mxu0 0.0
        %504 = vmatpush2.msra.mxu0 0.0
        %505 = vmatprep.subr.mxu0 0.0
        %506 = vmatpush2.msra.mxu0 0.0
        %507 = vmatprep.subr.mxu0 0.0
        %508 = vmatpush2.msra.mxu0 0.0
        %509 = vmatprep.subr.mxu0 0.0
        %510 = vmatpush2.msra.mxu0 0.0
        %511 = vmatprep.subr.mxu0 0.0
        %512 = vmatpush2.msra.mxu0 0.0
        %513 = vmatprep.subr.mxu0 0.0
        %514 = vmatpush2.msra.mxu0 0.0
        %515 = vmatprep.subr.mxu0 0.0
        %516 = vmatpush2.msra.mxu0 0.0
        %517 = vmatprep.subr.mxu0 0.0
        %518 = vmatpush2.msra.mxu0 0.0
        %519 = vmatprep.subr.mxu0 0.0
        %520 = vmatpush2.msra.mxu0 0.0
        %521 = vmatprep.mubr.f32.mxu0 0.0
        %522 = vmatmul.mubr.f32.gmra.mxu0 %v426
        %v523 = vpop.f32.mrf.mxu0
        %v524 = vadd.f32 %v455, %v523
        %v525 = vpop.f32.mrf.mxu0
        %526 = vmatprep.mubr.f32.mxu0 0.0
        %527 = vmatmul.mubr.f32.gmra.mxu0 %v427
        %v528 = vpop.f32.mrf.mxu0
        %v529 = vadd.f32 %v455, %v528
        %v530 = vpop.f32.mrf.mxu0
        %531 = vmatprep.mubr.f32.mxu0 0.0
        %532 = vmatmul.mubr.f32.gmra.mxu0 %v428
        %v533 = vpop.f32.mrf.mxu0
        %v534 = vadd.f32 %v455, %v533
        %v535 = vpop.f32.mrf.mxu0
        %536 = vmatprep.mubr.f32.mxu0 0.0
        %537 = vmatmul.mubr.f32.gmra.mxu0 %v429
        %v538 = vpop.f32.mrf.mxu0
        %v539 = vadd.f32 %v455, %v538
        %v540 = vpop.f32.mrf.mxu0
        %541 = vmatprep.mubr.f32.mxu0 0.0
        %542 = vmatmul.mubr.f32.gmra.mxu0 %v430
        %v543 = vpop.f32.mrf.mxu0
        %v544 = vadd.f32 %v455, %v543
        %v545 = vpop.f32.mrf.mxu0
        %546 = vmatprep.mubr.f32.mxu0 0.0
        %547 = vmatmul.mubr.f32.gmra.mxu0 %v431
        %v548 = vpop.f32.mrf.mxu0
        %v549 = vadd.f32 %v455, %v548
        %v550 = vpop.f32.mrf.mxu0
        %551 = vmatprep.mubr.f32.mxu0 0.0
        %552 = vmatmul.mubr.f32.gmra.mxu0 %v432
        %v553 = vpop.f32.mrf.mxu0
        %v554 = vadd.f32 %v455, %v553
        %v555 = vpop.f32.mrf.mxu0
        %556 = vmatprep.mubr.f32.mxu0 0.0
        %557 = vmatmul.mubr.f32.gmra.mxu0 %v433
        %v558 = vpop.f32.mrf.mxu0
        %v559 = vadd.f32 %v455, %v558
        %v560 = vpop.f32.mrf.mxu0
        %561 = vdwg.mxu0
        %v562 = vmax.f32 %v524, 0.0
        %v563 = vmax.f32 %v529, 0.0
        %v564 = vmax.f32 %v534, 0.0
        %v565 = vmax.f32 %v539, 0.0
        %v566 = vmax.f32 %v544, 0.0
        %v567 = vmax.f32 %v549, 0.0
        %v568 = vmax.f32 %v554, 0.0
        %v569 = vmax.f32 %v559, 0.0
        %570 = vst [vmem:[%s250] sm:$0xff] %v562
        %571 = vst [vmem:[%s250 + $0x8] sm:$0xff] %v563
        %572 = vst [vmem:[%s250 + $0x10] sm:$0xff] %v564
        %573 = vst [vmem:[%s250 + $0x18] sm:$0xff] %v565
        %574 = vst [vmem:[%s250 + $0x20] sm:$0xff] %v566
        %575 = vst [vmem:[%s250 + $0x28] sm:$0xff] %v567
        %576 = vst [vmem:[%s250 + $0x30] sm:$0xff] %v568
        %577 = vst [vmem:[%s250 + $0x38] sm:$0xff] %v569
        %s578 = sand.u32 %s150, 1
        %s579 = sand.u32 %s150, 1
        %s580 = smul.addr %s579, 64
        %s581 = scalar_lea.vmem [#allocation2], %s580
        // Predicated region
        $region41: #{tpu_custom_call.1} parent=39 // pred_check
          %p582 = pneg %p160
        $region42: #{tpu_custom_call.1} parent=39 // pred_check_branch
          %584 = sbr.rel (%p582) target = $region44
        $region43: #{tpu_custom_call.1} parent=39 // pred_region
          %s585 = smul.u32 8, %s21
          %s586 = ssub.s32 13, %s585
          %p587 = scmp.lt.s32.totalorder %s586, 8
          %s588 = scalar_select %p587, %s586, 8
          %s589 = smul.u32 128, %s588
          %p590 = scmp.ne.s32.totalorder 0, %s589
          %s591 = smul.addr %s20, 13
          %s592 = sadd.s32 %s585, %s591
          %s593 = smul.addr %s592, 8
          %s594 = scalar_lea.vmem %s5, %s593
          // Predicated region
          $region45: #{tpu_custom_call.1} parent=43 // pred_check
            %p595 = pneg %p590
          $region46: #{tpu_custom_call.1} parent=43 // pred_check_branch
            %597 = sbr.rel (%p595) target = $region48
          $region47: #{tpu_custom_call.1} parent=43 // pred_region
            // Predicated region
            $region49: #{tpu_custom_call.1} parent=47 // pred_check
              _
            $region50: #{tpu_custom_call.1} parent=47 // pred_check_branch
              %599 = sbr.rel (0) target = $region52
            $region51: #{tpu_custom_call.1} parent=47 // pred_region
              // Predicated region
              $region71: #{tpu_custom_call.1} parent=51 // pred_check
                _
              $region72: #{tpu_custom_call.1} parent=51 // pred_check_branch
                %663 = sbr.rel (0) target = $region74
              $region73: #{tpu_custom_call.1} parent=51 // pred_region
                %s664 = sshrl.u32 %s588, 3
                // While loop
                $region75: #{tpu_custom_call.1} parent=73 // loop_pre_header
                  _
                $region76: #{tpu_custom_call.1} parent=73 // loop_header
                  %s666 = sphi 0, %s668
                  %p667 = scmp.ge.s32.totalorder %s666, %s664
                  %s671 = sphi 0, %s692
                  %s672 = sphi %s581, %s695
                  %s673 = sphi %s594, %s696
                $region77: #{tpu_custom_call.1} parent=73 // loop_header_branch
                  %670 = sbr.rel (%p667) target = $region81
                $region78: #{tpu_custom_call.1} parent=73 // loop_body
                  %v674 = vld [vmem:[%s672] sm:$0xff]
                  %675 = vst [vmem:[%s673] sm:$0xff] %v674
                  %v676 = vld [vmem:[%s672 + $0x8] sm:$0xff]
                  %677 = vst [vmem:[%s673 + $0x8] sm:$0xff] %v676
                  %v678 = vld [vmem:[%s672 + $0x10] sm:$0xff]
                  %679 = vst [vmem:[%s673 + $0x10] sm:$0xff] %v678
                  %v680 = vld [vmem:[%s672 + $0x18] sm:$0xff]
                  %681 = vst [vmem:[%s673 + $0x18] sm:$0xff] %v680
                  %v682 = vld [vmem:[%s672 + $0x20] sm:$0xff]
                  %683 = vst [vmem:[%s673 + $0x20] sm:$0xff] %v682
                  %v684 = vld [vmem:[%s672 + $0x28] sm:$0xff]
                  %685 = vst [vmem:[%s673 + $0x28] sm:$0xff] %v684
                  %v686 = vld [vmem:[%s672 + $0x30] sm:$0xff]
                  %687 = vst [vmem:[%s673 + $0x30] sm:$0xff] %v686
                  %v688 = vld [vmem:[%s672 + $0x38] sm:$0xff]
                  %689 = vst [vmem:[%s673 + $0x38] sm:$0xff] %v688
                  %s690 = sadd.s32 1, %s671
                  %p691 = scmp.ge.s32.totalorder %s690, %s664
                  %s692 = scalar_select %p691, 0, %s690
                  %s693 = smul.u32 %s692, 64
                  %s694 = smul.u32 %s692, 64
                  %s695 = scalar_lea.vmem %s581, %s693 [#allocation2]
                  %s696 = scalar_lea.vmem %s594, %s694
                $region79: #{tpu_custom_call.1} parent=73 // loop_footer
                  %s668 = sadd.s32 %s666, 1
                $region80: #{tpu_custom_call.1} parent=73 // loop_footer_branch
                  %665 = sbr.rel target = $region76
                $region81: #{tpu_custom_call.1} parent=73 // loop_exit
                  _
                %s697 = sshrl.u32 %s588, 3
                %s698 = sand.u32 %s588, 7
                %s699 = smul.u32 %s697, 8
                %s700 = smul.u32 8, %s699
                %s701 = scalar_lea.vmem %s581, %s700 [#allocation2]
                %s702 = smul.u32 8, %s699
                %s703 = scalar_lea.vmem %s594, %s702
                // While loop
                $region82: #{tpu_custom_call.1} parent=73 // loop_pre_header
                  _
                $region83: #{tpu_custom_call.1} parent=73 // loop_header
                  %s705 = sphi 0, %s707
                  %p706 = scmp.ge.s32.totalorder %s705, %s698
                  %s710 = sphi 0, %s717
                  %s711 = sphi %s701, %s720
                  %s712 = sphi %s703, %s721
                $region84: #{tpu_custom_call.1} parent=73 // loop_header_branch
                  %709 = sbr.rel (%p706) target = $region88
                $region85: #{tpu_custom_call.1} parent=73 // loop_body
                  %v713 = vld [vmem:[%s711] sm:$0xff]
                  %714 = vst [vmem:[%s712] sm:$0xff] %v713
                  %s715 = sadd.s32 1, %s710
                  %p716 = scmp.ge.s32.totalorder %s715, %s698
                  %s717 = scalar_select %p716, 0, %s715
                  %s718 = smul.u32 %s717, 8
                  %s719 = smul.u32 %s717, 8
                  %s720 = scalar_lea.vmem %s701, %s718 [#allocation2]
                  %s721 = scalar_lea.vmem %s703, %s719
                $region86: #{tpu_custom_call.1} parent=73 // loop_footer
                  %s707 = sadd.s32 %s705, 1
                $region87: #{tpu_custom_call.1} parent=73 // loop_footer_branch
                  %704 = sbr.rel target = $region83
                $region88: #{tpu_custom_call.1} parent=73 // loop_exit
                  _
              $region74: #{tpu_custom_call.1} parent=51 // pred_fallthru
                _
              // Predicated region
              $region89: #{tpu_custom_call.1} parent=51 // pred_check
                _
              $region90: #{tpu_custom_call.1} parent=51 // pred_check_branch
                %723 = sbr.rel target = $region92
              $region91: #{tpu_custom_call.1} parent=51 // pred_region
                _
              $region92: #{tpu_custom_call.1} parent=51 // pred_fallthru
                _
            $region52: #{tpu_custom_call.1} parent=47 // pred_fallthru
              _
            // Predicated region
            $region53: #{tpu_custom_call.1} parent=47 // pred_check
              _
            $region54: #{tpu_custom_call.1} parent=47 // pred_check_branch
              %601 = sbr.rel target = $region56
            $region55: #{tpu_custom_call.1} parent=47 // pred_region
              %s603 = ssub.s32 256, 1
              %s604 = sshrl.u32 %s588, 3
              // While loop
              $region57: #{tpu_custom_call.1} parent=55 // loop_pre_header
                _
              $region58: #{tpu_custom_call.1} parent=55 // loop_header
                %s606 = sphi 0, %s608
                %p607 = scmp.ge.s32.totalorder %s606, %s604
                %s611 = sphi 0, %s632
                %s612 = sphi %s581, %s635
                %s613 = sphi %s594, %s636
              $region59: #{tpu_custom_call.1} parent=55 // loop_header_branch
                %610 = sbr.rel (%p607) target = $region63
              $region60: #{tpu_custom_call.1} parent=55 // loop_body
                %v614 = vld [vmem:[%s612] sm:%s603]
                %615 = vst [vmem:[%s613] sm:%s603] %v614
                %v616 = vld [vmem:[%s612 + $0x8] sm:%s603]
                %617 = vst [vmem:[%s613 + $0x8] sm:%s603] %v616
                %v618 = vld [vmem:[%s612 + $0x10] sm:%s603]
                %619 = vst [vmem:[%s613 + $0x10] sm:%s603] %v618
                %v620 = vld [vmem:[%s612 + $0x18] sm:%s603]
                %621 = vst [vmem:[%s613 + $0x18] sm:%s603] %v620
                %v622 = vld [vmem:[%s612 + $0x20] sm:%s603]
                %623 = vst [vmem:[%s613 + $0x20] sm:%s603] %v622
                %v624 = vld [vmem:[%s612 + $0x28] sm:%s603]
                %625 = vst [vmem:[%s613 + $0x28] sm:%s603] %v624
                %v626 = vld [vmem:[%s612 + $0x30] sm:%s603]
                %627 = vst [vmem:[%s613 + $0x30] sm:%s603] %v626
                %v628 = vld [vmem:[%s612 + $0x38] sm:%s603]
                %629 = vst [vmem:[%s613 + $0x38] sm:%s603] %v628
                %s630 = sadd.s32 1, %s611
                %p631 = scmp.ge.s32.totalorder %s630, %s604
                %s632 = scalar_select %p631, 0, %s630
                %s633 = smul.u32 %s632, 64
                %s634 = smul.u32 %s632, 64
                %s635 = scalar_lea.vmem %s581, %s633 [#allocation2]
                %s636 = scalar_lea.vmem %s594, %s634
              $region61: #{tpu_custom_call.1} parent=55 // loop_footer
                %s608 = sadd.s32 %s606, 1
              $region62: #{tpu_custom_call.1} parent=55 // loop_footer_branch
                %605 = sbr.rel target = $region58
              $region63: #{tpu_custom_call.1} parent=55 // loop_exit
                _
              %s637 = sshrl.u32 %s588, 3
              %s638 = sand.u32 %s588, 7
              %s639 = smul.u32 %s637, 8
              %s640 = smul.u32 8, %s639
              %s641 = scalar_lea.vmem %s581, %s640 [#allocation2]
              %s642 = smul.u32 8, %s639
              %s643 = scalar_lea.vmem %s594, %s642
              // While loop
              $region64: #{tpu_custom_call.1} parent=55 // loop_pre_header
                _
              $region65: #{tpu_custom_call.1} parent=55 // loop_header
                %s645 = sphi 0, %s647
                %p646 = scmp.ge.s32.totalorder %s645, %s638
                %s650 = sphi 0, %s657
                %s651 = sphi %s641, %s660
                %s652 = sphi %s643, %s661
              $region66: #{tpu_custom_call.1} parent=55 // loop_header_branch
                %649 = sbr.rel (%p646) target = $region70
              $region67: #{tpu_custom_call.1} parent=55 // loop_body
                %v653 = vld [vmem:[%s651] sm:%s603]
                %654 = vst [vmem:[%s652] sm:%s603] %v653
                %s655 = sadd.s32 1, %s650
                %p656 = scmp.ge.s32.totalorder %s655, %s638
                %s657 = scalar_select %p656, 0, %s655
                %s658 = smul.u32 %s657, 8
                %s659 = smul.u32 %s657, 8
                %s660 = scalar_lea.vmem %s641, %s658 [#allocation2]
                %s661 = scalar_lea.vmem %s643, %s659
              $region68: #{tpu_custom_call.1} parent=55 // loop_footer
                %s647 = sadd.s32 %s645, 1
              $region69: #{tpu_custom_call.1} parent=55 // loop_footer_branch
                %644 = sbr.rel target = $region65
              $region70: #{tpu_custom_call.1} parent=55 // loop_exit
                _
            $region56: #{tpu_custom_call.1} parent=47 // pred_fallthru
              _
          $region48: #{tpu_custom_call.1} parent=43 // pred_fallthru
            _
          %724 = vnop
        $region44: #{tpu_custom_call.1} parent=39 // pred_fallthru
          _
      $region40: #{tpu_custom_call.1} parent=5 // pred_fallthru
        _
      %p725 = scmp.le.s32.totalorder 2, %s11
      // Predicated region
      $region93: #{tpu_custom_call.1} parent=5 // pred_check
        %p726 = pneg %p725
      $region94: #{tpu_custom_call.1} parent=5 // pred_check_branch
        %728 = sbr.rel (%p726) target = $region96
      $region95: #{tpu_custom_call.1} parent=5 // pred_region
        %s729 = ssub.s32 %s11, 2
        // Predicated region
        $region97: #{tpu_custom_call.1} parent=95 // pred_check
          %p730 = pneg %p166
        $region98: #{tpu_custom_call.1} parent=95 // pred_check_branch
          %732 = sbr.rel (%p730) target = $region100
        $region99: #{tpu_custom_call.1} parent=95 // pred_region
          %s733 = sand.u32 %s151, 1
          %s734 = sand.u32 %s151, 1
          %s735 = smul.addr %s734, 64
          %s736 = scalar_lea.vmem [#allocation2], %s735
        $region100: #{tpu_custom_call.1} parent=95 // pred_fallthru
          _
      $region96: #{tpu_custom_call.1} parent=5 // pred_fallthru
        _
    $region6: #{tpu_custom_call.1} parent=1 // loop_footer
      %s15 = sadd.s32 1, %s11
    $region7: #{tpu_custom_call.1} parent=1 // loop_footer_branch
      %10 = sbr.rel target = $region3
    $region8: #{tpu_custom_call.1} parent=1 // loop_exit
      _

</llo_original>
